<compile_context>
chip_gen: v6e
topology: v6e:2x2x1
jax: 0.10.0
libtpu: 0.0.40
codegen_flags: <defaults>
</compile_context>

<pallas_src>
import functools

import jax
import jax.numpy as jnp
from jax.experimental import pallas as pl
from jax.experimental.pallas import tpu as pltpu

Z_DIM = 64
HIDDEN = 256
IMG_DIM = 784
IMG_DIM_PAD = 896  # 7 * 128 -> lane-dense output tiles


def _round_up(n, m):
    return ((n + m - 1) // m) * m


def _generator_kernel(x_ref, w1_ref, b1_ref, w2_ref, b2_ref, o_ref):
    # x_ref:  (TB, Z_DIM)            bf16  VMEM
    # w1_ref: (Z_DIM, HIDDEN)        bf16  VMEM
    # b1_ref: (1, HIDDEN)            f32   VMEM
    # w2_ref: (HIDDEN, IMG_DIM_PAD)  bf16  VMEM
    # b2_ref: (1, IMG_DIM_PAD)       f32   VMEM
    # o_ref:  (TB, IMG_DIM_PAD)      bf16  VMEM
    x = x_ref[...]

    # Linear 1 (MXU, bf16 operands, f32 accumulate) + bias (f32, VPU)
    h = jnp.dot(x, w1_ref[...], preferred_element_type=jnp.float32) + b1_ref[...]
    # LeakyReLU(0.1) in f32 (VPU)
    h = jnp.where(h > 0, h, 0.1 * h)
    # Linear 2 (MXU, bf16 operands, f32 accumulate) + bias
    y = jnp.dot(h.astype(jnp.bfloat16), w2_ref[...],
                preferred_element_type=jnp.float32) + b2_ref[...]
    # Tanh in f32 (EUP), store as bf16
    o_ref[...] = jnp.tanh(y).astype(o_ref.dtype)


@functools.partial(jax.jit, static_argnames=("tb",))
def generator_forward(x, w1, b1, w2, b2, *, tb=512):
    """x: (B, Z_DIM) f32/bf16; w1: (Z_DIM, HIDDEN); b1: (1, HIDDEN);
    w2: (HIDDEN, IMG_DIM); b2: (1, IMG_DIM). Returns (B, IMG_DIM) bf16."""
    B = x.shape[0]

    # Effective batch tile: at most `tb`, multiple of 8, and (when the batch
    # allows it) at least two grid steps so v7x can shard across its 2 TCs.
    tb_eff = min(tb, _round_up(B, 8))
    if B > 8 and _round_up(B, tb_eff) == tb_eff:   # would be a single grid step
        tb_eff = _round_up((B + 1) // 2, 8)
    B_pad = _round_up(B, tb_eff)
    grid = (B_pad // tb_eff,)

    # Wrapper-side layout / dtype plumbing (cheap, fused by XLA).
    x_p = x.astype(jnp.bfloat16)
    if B_pad != B:
        x_p = jnp.pad(x_p, ((0, B_pad - B), (0, 0)))
    w1_p = w1.astype(jnp.bfloat16)
    b1_p = b1.reshape(1, HIDDEN).astype(jnp.float32)
    w2_p = jnp.pad(w2.astype(jnp.bfloat16), ((0, 0), (0, IMG_DIM_PAD - IMG_DIM)))
    b2_p = jnp.pad(b2.reshape(1, IMG_DIM).astype(jnp.float32),
                   ((0, 0), (0, IMG_DIM_PAD - IMG_DIM)))

    bytes_accessed = (
        x_p.size * 2 + w1_p.size * 2 + b1_p.size * 4
        + w2_p.size * 2 + b2_p.size * 4 + B_pad * IMG_DIM_PAD * 2
    )
    cost = pl.CostEstimate(
        flops=2 * B_pad * (Z_DIM * HIDDEN + HIDDEN * IMG_DIM_PAD),
        transcendentals=B_pad * IMG_DIM_PAD,
        bytes_accessed=bytes_accessed,
    )

    out = pl.pallas_call(
        _generator_kernel,
        out_shape=jax.ShapeDtypeStruct((B_pad, IMG_DIM_PAD), jnp.bfloat16),
        grid_spec=pltpu.PrefetchScalarGridSpec(
            num_scalar_prefetch=0,
            grid=grid,
            in_specs=[
                # batch-tiled activations
                pl.BlockSpec((tb_eff, Z_DIM), lambda i: (i, 0)),
                # weights / biases: full arrays, resident across the grid
                pl.BlockSpec((Z_DIM, HIDDEN), lambda i: (0, 0)),
                pl.BlockSpec((1, HIDDEN), lambda i: (0, 0)),
                pl.BlockSpec((HIDDEN, IMG_DIM_PAD), lambda i: (0, 0)),
                pl.BlockSpec((1, IMG_DIM_PAD), lambda i: (0, 0)),
            ],
            out_specs=pl.BlockSpec((tb_eff, IMG_DIM_PAD), lambda i: (i, 0)),
        ),
        compiler_params=pltpu.CompilerParams(
            dimension_semantics=("parallel",),
        ),
        cost_estimate=cost,
    )(x_p, w1_p, b1_p, w2_p, b2_p)

    # Drop batch / lane padding.
    return out[:B, :IMG_DIM]


def init_params(key):
    """Deterministic PyTorch-nn.Linear-style init (uniform +-1/sqrt(fan_in))."""
    k1, k2, k3, k4 = jax.random.split(key, 4)
    bound1 = 1.0 / (Z_DIM ** 0.5)
    bound2 = 1.0 / (HIDDEN ** 0.5)
    w1 = jax.random.uniform(k1, (Z_DIM, HIDDEN), jnp.float32, -bound1, bound1)
    b1 = jax.random.uniform(k2, (1, HIDDEN), jnp.float32, -bound1, bound1)
    w2 = jax.random.uniform(k3, (HIDDEN, IMG_DIM), jnp.float32, -bound2, bound2)
    b2 = jax.random.uniform(k4, (1, IMG_DIM), jnp.float32, -bound2, bound2)
    return w1, b1, w2, b2


def reference_forward(x, w1, b1, w2, b2):
    h = x @ w1 + b1
    h = jnp.where(h > 0, h, 0.1 * h)
    return jnp.tanh(h @ w2 + b2)


if __name__ == "__main__":
    key = jax.random.PRNGKey(0)
    k_params, k_x = jax.random.split(key)

    w1, b1, w2, b2 = init_params(k_params)
    batch = 64
    x = jax.random.normal(k_x, (batch, Z_DIM), jnp.float32)  # latent noise z

    out = generator_forward(x, w1, b1, w2, b2)
    out = jax.block_until_ready(out)

    ref = reference_forward(x, w1, b1, w2, b2)
    assert out.shape == (batch, IMG_DIM)
    # bf16 MXU operands + bf16 output -> loosened tolerance vs f32 reference
    assert jnp.allclose(out.astype(jnp.float32), ref, atol=3e-2, rtol=0.0), \
        "mismatch vs JAX reference"

    print("KERNEL_OK")
</pallas_src>

<mosaic_0001>
module attributes {stable_mosaic.version = 11 : i64} {
  func.func @_generator_kernel(%arg0: i32, %arg1: memref<32x64xbf16, #tpu.memory_space<vmem>>, %arg2: memref<64x256xbf16, #tpu.memory_space<vmem>>, %arg3: memref<1x256xf32, #tpu.memory_space<vmem>>, %arg4: memref<256x896xbf16, #tpu.memory_space<vmem>>, %arg5: memref<1x896xf32, #tpu.memory_space<vmem>>, %arg6: memref<32x896xbf16, #tpu.memory_space<vmem>>) attributes {dimension_semantics = [#tpu.dimension_semantics<parallel>], iteration_bounds = array<i64: 2>, scalar_prefetch = 0 : i64, scratch_operands = 0 : i64, tpu.core_type = #tpu.core_type<tc>, window_params = [{transform_indices = @transform_0, window_bounds = array<i64: 32, 64>}, {pipeline_mode = #tpu.pipeline_mode<synchronous>, transform_indices = @transform_1, window_bounds = array<i64: 64, 256>}, {pipeline_mode = #tpu.pipeline_mode<synchronous>, transform_indices = @transform_2, window_bounds = array<i64: 1, 256>}, {pipeline_mode = #tpu.pipeline_mode<synchronous>, transform_indices = @transform_3, window_bounds = array<i64: 256, 896>}, {pipeline_mode = #tpu.pipeline_mode<synchronous>, transform_indices = @transform_4, window_bounds = array<i64: 1, 896>}, {transform_indices = @transform_5, window_bounds = array<i64: 32, 896>}]} {
    %c0 = arith.constant 0 : index
    %c0_0 = arith.constant 0 : index
    %0 = vector.load %arg1[%c0, %c0_0] : memref<32x64xbf16, #tpu.memory_space<vmem>>, vector<32x64xbf16>
    %c0_1 = arith.constant 0 : index
    %c0_2 = arith.constant 0 : index
    %1 = vector.load %arg2[%c0_1, %c0_2] : memref<64x256xbf16, #tpu.memory_space<vmem>>, vector<64x256xbf16>
    %cst = arith.constant dense<0.000000e+00> : vector<32x256xf32>
    %2 = tpu.matmul %0, %1, %cst {dimension_numbers = #tpu.dot_dimension_numbers<[1], [0], [0], [1], [0, 0, 1, 1], [], []>} : vector<32x64xbf16>, vector<64x256xbf16>, vector<32x256xf32> -> vector<32x256xf32>
    %c0_3 = arith.constant 0 : index
    %c0_4 = arith.constant 0 : index
    %3 = vector.load %arg3[%c0_3, %c0_4] : memref<1x256xf32, #tpu.memory_space<vmem>>, vector<1x256xf32>
    %4 = vector.broadcast %3 : vector<1x256xf32> to vector<32x256xf32>
    %5 = arith.addf %2, %4 : vector<32x256xf32>
    %cst_5 = arith.constant 0.000000e+00 : f32
    %6 = vector.broadcast %cst_5 : f32 to vector<32x256xf32>
    %7 = arith.cmpf ogt, %5, %6 : vector<32x256xf32>
    %cst_6 = arith.constant 1.000000e-01 : f32
    %8 = vector.broadcast %cst_6 : f32 to vector<32x256xf32>
    %9 = arith.mulf %8, %5 : vector<32x256xf32>
    %10 = arith.select %7, %5, %9 : vector<32x256xi1>, vector<32x256xf32>
    %11 = arith.truncf %10 : vector<32x256xf32> to vector<32x256xbf16>
    %c0_7 = arith.constant 0 : index
    %c0_8 = arith.constant 0 : index
    %12 = vector.load %arg4[%c0_7, %c0_8] : memref<256x896xbf16, #tpu.memory_space<vmem>>, vector<256x896xbf16>
    %cst_9 = arith.constant dense<0.000000e+00> : vector<32x896xf32>
    %13 = tpu.matmul %11, %12, %cst_9 {dimension_numbers = #tpu.dot_dimension_numbers<[1], [0], [0], [1], [0, 0, 1, 1], [], []>} : vector<32x256xbf16>, vector<256x896xbf16>, vector<32x896xf32> -> vector<32x896xf32>
    %c0_10 = arith.constant 0 : index
    %c0_11 = arith.constant 0 : index
    %14 = vector.load %arg5[%c0_10, %c0_11] : memref<1x896xf32, #tpu.memory_space<vmem>>, vector<1x896xf32>
    %15 = vector.broadcast %14 : vector<1x896xf32> to vector<32x896xf32>
    %16 = arith.addf %13, %15 : vector<32x896xf32>
    %17 = math.tanh %16 : vector<32x896xf32>
    %18 = arith.truncf %17 : vector<32x896xf32> to vector<32x896xbf16>
    %c0_12 = arith.constant 0 : index
    %c0_13 = arith.constant 0 : index
    %19 = vector.load %arg6[%c0_12, %c0_13] : memref<32x896xbf16, #tpu.memory_space<vmem>>, vector<32x896xbf16>
    tpu.vector_store %arg6[%c0_12, %c0_13], %18 {strides = array<i32>} : memref<32x896xbf16, #tpu.memory_space<vmem>>, vector<32x896xbf16>,
    return
  }
  func.func @transform_0(%arg0: i32) -> (i32, i32) {
    %c0_i32 = arith.constant 0 : i32
    %c0_i32_0 = arith.constant 0 : i32
    return %arg0, %c0_i32 : i32, i32
  }
  func.func @transform_1(%arg0: i32) -> (i32, i32) {
    %c0_i32 = arith.constant 0 : i32
    %c0_i32_0 = arith.constant 0 : i32
    %c0_i32_1 = arith.constant 0 : i32
    return %c0_i32, %c0_i32_0 : i32, i32
  }
  func.func @transform_2(%arg0: i32) -> (i32, i32) {
    %c0_i32 = arith.constant 0 : i32
    %c0_i32_0 = arith.constant 0 : i32
    %c0_i32_1 = arith.constant 0 : i32
    return %c0_i32, %c0_i32_0 : i32, i32
  }
  func.func @transform_3(%arg0: i32) -> (i32, i32) {
    %c0_i32 = arith.constant 0 : i32
    %c0_i32_0 = arith.constant 0 : i32
    %c0_i32_1 = arith.constant 0 : i32
    return %c0_i32, %c0_i32_0 : i32, i32
  }
  func.func @transform_4(%arg0: i32) -> (i32, i32) {
    %c0_i32 = arith.constant 0 : i32
    %c0_i32_0 = arith.constant 0 : i32
    %c0_i32_1 = arith.constant 0 : i32
    return %c0_i32, %c0_i32_0 : i32, i32
  }
  func.func @transform_5(%arg0: i32) -> (i32, i32) {
    %c0_i32 = arith.constant 0 : i32
    %c0_i32_0 = arith.constant 0 : i32
    return %arg0, %c0_i32 : i32, i32
  }
}

</mosaic_0001>

<llo_original>
// kernel: generator_forward.1
$region0: #{generator_forward.1}
  #allocation0 [shape = 'u32[]', space=smem, size = 0x4, offset = 0x4, fixed_abs, tag = 'smem constant byte address 0x4 - core index']
  #allocation1 [shape = 'u32[144,128]{1,0:T(1,128)}', space=vmem, size = 0x12000, scoped, tag = 'internal scratch']
  %s0 = inlined_call_operand.vmem [shape: bf16[64,64], index: 0, kind: input, shape index: {}]
  %s1 = inlined_call_operand.vmem [shape: bf16[64,256], index: 1, kind: input, shape index: {}]
  %s2 = inlined_call_operand.vmem [shape: f32[1,256], index: 2, kind: input, shape index: {}]
  %s3 = inlined_call_operand.vmem [shape: bf16[256,896], index: 3, kind: input, shape index: {}]
  %s4 = inlined_call_operand.vmem [shape: f32[1,896], index: 4, kind: input, shape index: {}]
  %s5 = inlined_call_operand.hbm [shape: bf16[64,896], index: 5, kind: output, shape index: {}]
  %s6 = sld [smem:[#allocation0]]
  $region53: #{generator_forward.1} parent=0
    _
  %s8 = ssub.s32 1, %s6
  %s9 = scalar_select 0, %s8, %s6
  $region1: #{generator_forward.1} parent=0
    #allocation2 [shape = 'u8[114688]{0}', space=vmem, size = 0x1c000, scoped, tag = 'output window, operand 0']
    #allocation3 [shape = 's32[2]{0}', space=sflag, size = 0x8, scoped, tag = 'scoped memory for generator_forward.1']
    %10 = vsyncpa [#allocation3], 0
    %s11 = scalar_lea.sflag [#allocation3], 1
    %12 = vsyncpa %s11, 0
    loop: start=0, step=1, limit=4
    $region2: #{generator_forward.1} parent=1 // loop_pre_header
      _
    $region3: #{generator_forward.1} parent=1 // loop_header
      %s14 = sphi 0, %s18
      %p15 = scmp.ge.s32.totalorder %s14, 4
      %s24 = sphi 0, %s26
      %s27 = sphi 0, %s24
      %s28 = sphi 0, %s27
      %s44 = sphi 0, %s28
      %s48 = sphi 0, %s48
      %s50 = sphi 0, %s48
      %s51 = sphi 0, %s50
      %s65 = sphi 0, %s51
      %s69 = sphi 0, %s69
      %s71 = sphi 0, %s69
      %s72 = sphi 0, %s71
      %s86 = sphi 0, %s72
      %s90 = sphi 0, %s90
      %s92 = sphi 0, %s90
      %s93 = sphi 0, %s92
      %s107 = sphi 0, %s93
      %s111 = sphi 0, %s111
      %s113 = sphi 0, %s111
      %s114 = sphi 0, %s113
      %s128 = sphi 0, %s114
      %s134 = sphi 0, %s136
      %s137 = sphi 0, %s134
      %s138 = sphi 0, %s137
      %s154 = sphi 0, %s138
    $region4: #{generator_forward.1} parent=1 // loop_header_branch
      %17 = sbr.rel (%p15) target = $region8
    $region5: #{generator_forward.1} parent=1 // loop_body
      %s19 = ssub.s32 %s14, 1
      %s20 = ssub.s32 %s14, 2
      %s21 = sadd.s32 %s14, 1
      %s22 = ssub.s32 %s14, %s21
      %p23 = scmp.eq.s32.totalorder %s22, 0
      %s25 = sadd.s32 %s24, 1
      %s26 = scalar_select %p23, %s24, %s25
      %p29 = pneg %p23
      %p30 = scmp.eq.s32.totalorder %s14, 1
      %p31 = por %p29, %p30
      %p32 = scmp.ne.s32.totalorder %s24, %s27
      %p33 = scmp.eq.s32.totalorder %s14, 0
      %p34 = por %p32, %p33
      %p35 = scmp.ne.s32.totalorder %s24, %s27
      %p36 = scmp.eq.s32.totalorder %s19, 1
      %p37 = por %p35, %p36
      %p38 = scmp.ne.s32.totalorder %s27, %s28
      %p39 = scmp.eq.s32.totalorder %s19, 0
      %p40 = por %p38, %p39
      %p41 = scmp.ne.s32.totalorder %s27, %s28
      %p42 = scmp.eq.s32.totalorder %s20, 1
      %p43 = por %p41, %p42
      %p45 = scmp.ne.s32.totalorder %s28, %s44
      %p46 = scmp.eq.s32.totalorder %s20, 0
      %p47 = por %p45, %p46
      %s49 = sadd.s32 %s48, 1
      %p52 = scmp.eq.s32.totalorder %s14, 1
      %p53 = scmp.ne.s32.totalorder %s48, %s50
      %p54 = scmp.eq.s32.totalorder %s14, 0
      %p55 = por %p53, %p54
      %p56 = scmp.ne.s32.totalorder %s48, %s50
      %p57 = scmp.eq.s32.totalorder %s19, 1
      %p58 = por %p56, %p57
      %p59 = scmp.ne.s32.totalorder %s50, %s51
      %p60 = scmp.eq.s32.totalorder %s19, 0
      %p61 = por %p59, %p60
      %p62 = scmp.ne.s32.totalorder %s50, %s51
      %p63 = scmp.eq.s32.totalorder %s20, 1
      %p64 = por %p62, %p63
      %p66 = scmp.ne.s32.totalorder %s51, %s65
      %p67 = scmp.eq.s32.totalorder %s20, 0
      %p68 = por %p66, %p67
      %s70 = sadd.s32 %s69, 1
      %p73 = scmp.eq.s32.totalorder %s14, 1
      %p74 = scmp.ne.s32.totalorder %s69, %s71
      %p75 = scmp.eq.s32.totalorder %s14, 0
      %p76 = por %p74, %p75
      %p77 = scmp.ne.s32.totalorder %s69, %s71
      %p78 = scmp.eq.s32.totalorder %s19, 1
      %p79 = por %p77, %p78
      %p80 = scmp.ne.s32.totalorder %s71, %s72
      %p81 = scmp.eq.s32.totalorder %s19, 0
      %p82 = por %p80, %p81
      %p83 = scmp.ne.s32.totalorder %s71, %s72
      %p84 = scmp.eq.s32.totalorder %s20, 1
      %p85 = por %p83, %p84
      %p87 = scmp.ne.s32.totalorder %s72, %s86
      %p88 = scmp.eq.s32.totalorder %s20, 0
      %p89 = por %p87, %p88
      %s91 = sadd.s32 %s90, 1
      %p94 = scmp.eq.s32.totalorder %s14, 1
      %p95 = scmp.ne.s32.totalorder %s90, %s92
      %p96 = scmp.eq.s32.totalorder %s14, 0
      %p97 = por %p95, %p96
      %p98 = scmp.ne.s32.totalorder %s90, %s92
      %p99 = scmp.eq.s32.totalorder %s19, 1
      %p100 = por %p98, %p99
      %p101 = scmp.ne.s32.totalorder %s92, %s93
      %p102 = scmp.eq.s32.totalorder %s19, 0
      %p103 = por %p101, %p102
      %p104 = scmp.ne.s32.totalorder %s92, %s93
      %p105 = scmp.eq.s32.totalorder %s20, 1
      %p106 = por %p104, %p105
      %p108 = scmp.ne.s32.totalorder %s93, %s107
      %p109 = scmp.eq.s32.totalorder %s20, 0
      %p110 = por %p108, %p109
      %s112 = sadd.s32 %s111, 1
      %p115 = scmp.eq.s32.totalorder %s14, 1
      %p116 = scmp.ne.s32.totalorder %s111, %s113
      %p117 = scmp.eq.s32.totalorder %s14, 0
      %p118 = por %p116, %p117
      %p119 = scmp.ne.s32.totalorder %s111, %s113
      %p120 = scmp.eq.s32.totalorder %s19, 1
      %p121 = por %p119, %p120
      %p122 = scmp.ne.s32.totalorder %s113, %s114
      %p123 = scmp.eq.s32.totalorder %s19, 0
      %p124 = por %p122, %p123
      %p125 = scmp.ne.s32.totalorder %s113, %s114
      %p126 = scmp.eq.s32.totalorder %s20, 1
      %p127 = por %p125, %p126
      %p129 = scmp.ne.s32.totalorder %s114, %s128
      %p130 = scmp.eq.s32.totalorder %s20, 0
      %p131 = por %p129, %p130
      %s132 = ssub.s32 %s14, %s21
      %p133 = scmp.eq.s32.totalorder %s132, 0
      %s135 = sadd.s32 %s134, 1
      %s136 = scalar_select %p133, %s134, %s135
      %p139 = pneg %p133
      %p140 = scmp.eq.s32.totalorder %s14, 1
      %p141 = por %p139, %p140
      %p142 = scmp.ne.s32.totalorder %s134, %s137
      %p143 = scmp.eq.s32.totalorder %s14, 0
      %p144 = por %p142, %p143
      %p145 = scmp.ne.s32.totalorder %s134, %s137
      %p146 = scmp.eq.s32.totalorder %s19, 1
      %p147 = por %p145, %p146
      %p148 = scmp.ne.s32.totalorder %s137, %s138
      %p149 = scmp.eq.s32.totalorder %s19, 0
      %p150 = por %p148, %p149
      %p151 = scmp.ne.s32.totalorder %s137, %s138
      %p152 = scmp.eq.s32.totalorder %s20, 1
      %p153 = por %p151, %p152
      %p155 = scmp.ne.s32.totalorder %s138, %s154
      %p156 = scmp.eq.s32.totalorder %s20, 0
      %p157 = por %p155, %p156
      %p158 = scmp.le.s32.totalorder 1, %s14
      %p159 = scmp.lt.s32.totalorder %s14, 3
      %p160 = pnand %p158, %p159
      %p161 = pneg %p160
      // Predicated region
      $region9: #{generator_forward.1} parent=5 // pred_check
        _
      $region10: #{generator_forward.1} parent=5 // pred_check_branch
        %163 = sbr.rel (%p160) target = $region12
      $region11: #{generator_forward.1} parent=5 // pred_region
        %s164 = ssub.s32 %s14, 1
        // Predicated region
        $region13: #{generator_forward.1} parent=11 // pred_check
          %p165 = pneg %p61
        $region14: #{generator_forward.1} parent=11 // pred_check_branch
          %167 = sbr.rel (%p165) target = $region16
        $region15: #{generator_forward.1} parent=11 // pred_region
          _
        $region16: #{generator_forward.1} parent=11 // pred_fallthru
          _
        // Predicated region
        $region17: #{generator_forward.1} parent=11 // pred_check
          %p168 = pneg %p82
        $region18: #{generator_forward.1} parent=11 // pred_check_branch
          %170 = sbr.rel (%p168) target = $region20
        $region19: #{generator_forward.1} parent=11 // pred_region
          _
        $region20: #{generator_forward.1} parent=11 // pred_fallthru
          _
        // Predicated region
        $region21: #{generator_forward.1} parent=11 // pred_check
          %p171 = pneg %p103
        $region22: #{generator_forward.1} parent=11 // pred_check_branch
          %173 = sbr.rel (%p171) target = $region24
        $region23: #{generator_forward.1} parent=11 // pred_region
          _
        $region24: #{generator_forward.1} parent=11 // pred_fallthru
          _
        // Predicated region
        $region25: #{generator_forward.1} parent=11 // pred_check
          %p174 = pneg %p124
        $region26: #{generator_forward.1} parent=11 // pred_check_branch
          %176 = sbr.rel (%p174) target = $region28
        $region27: #{generator_forward.1} parent=11 // pred_region
          _
        $region28: #{generator_forward.1} parent=11 // pred_fallthru
          _
      $region12: #{generator_forward.1} parent=5 // pred_fallthru
        _
      %p177 = scmp.lt.s32.totalorder %s14, 2
      // Predicated region
      $region29: #{generator_forward.1} parent=5 // pred_check
        %p178 = pneg %p177
      $region30: #{generator_forward.1} parent=5 // pred_check_branch
        %180 = sbr.rel (%p178) target = $region32
      $region31: #{generator_forward.1} parent=5 // pred_region
        // Predicated region
        $region33: #{generator_forward.1} parent=31 // pred_check
          %p181 = pneg %p34
        $region34: #{generator_forward.1} parent=31 // pred_check_branch
          %183 = sbr.rel (%p181) target = $region36
        $region35: #{generator_forward.1} parent=31 // pred_region
          %s184 = smul.u32 4, %s14
          %p185 = scmp.lt.s32.totalorder %s184, 7
          %s186 = scalar_select %p185, %s184, 7
          %s187 = smul.addr %s186, 4
          %s188 = scalar_lea.vmem %s0, %s187
          %s189 = smul.u32 4, %s14
        $region36: #{generator_forward.1} parent=31 // pred_fallthru
          _
      $region32: #{generator_forward.1} parent=5 // pred_fallthru
        _
      %p190 = scmp.le.s32.totalorder 1, %s14
      %p191 = scmp.lt.s32.totalorder %s14, 3
      %p192 = pnand %p190, %p191
      %p193 = pneg %p192
      // Predicated region
      $region37: #{generator_forward.1} parent=5 // pred_check
        _
      $region38: #{generator_forward.1} parent=5 // pred_check_branch
        %195 = sbr.rel (%p192) target = $region40
      $region39: #{generator_forward.1} parent=5 // pred_region
        %s196 = ssub.s32 %s14, 1
        %s197 = smul.u32 4, %s19
        %p198 = scmp.lt.s32.totalorder %s197, 7
        %s199 = scalar_select %p198, %s197, 7
        %s200 = smul.addr %s199, 4
        %s201 = scalar_lea.vmem %s0, %s200
        %p202 = pneg %p40
        %p203 = pneg %p37
        %p204 = pneg %p61
        %p205 = pneg %p58
        %p206 = pneg %p82
        %p207 = pneg %p79
        %p208 = pneg %p103
        %p209 = pneg %p100
        %p210 = pneg %p124
        %p211 = pneg %p121
        %p212 = pneg %p150
        %p213 = pneg %p147
        %s214 = sand.u32 %s137, 1
        %s215 = scalar_lea.sflag [#allocation3], %s214
        %s216 = sand.u32 %s137, 1
        %s217 = smul.addr %s216, 112
        %s218 = scalar_lea.vmem [#allocation2], %s217
        %s219 = smul.u32 4, %s19
        %p220 = scmp.lt.s32.totalorder %s219, 7
        %s221 = scalar_select %p220, %s219, 7
        %s222 = smul.addr %s221, 4
        %s223 = scalar_lea.vmem %s0, %s222
        %s224 = smul.u32 4, %s19
        %s225 = smul.u32 4, %s19
        %v227 = vld [vmem:[%s223] sm:$0xf]
        %v228 = vld [vmem:[%s223 + $0x4] sm:$0xf]
        %v229 = vld [vmem:[%s223 + $0x8] sm:$0xf]
        %v230 = vld [vmem:[%s223 + $0xc] sm:$0xf]
        %v231 = vld [vmem:[%s1] sm:$0xff]
        %v232 = vld [vmem:[%s1 + $0x8] sm:$0xff]
        %v233 = vld [vmem:[%s1 + $0x10] sm:$0xff]
        %v234 = vld [vmem:[%s1 + $0x18] sm:$0xff]
        %v235 = vld [vmem:[%s1 + $0x20] sm:$0xff]
        %v236 = vld [vmem:[%s1 + $0x28] sm:$0xff]
        %v237 = vld [vmem:[%s1 + $0x30] sm:$0xff]
        %v238 = vld [vmem:[%s1 + $0x38] sm:$0xff]
        %v239 = vld [vmem:[%s2] sm:$0x3]
        %v241 = vlaneseq
        %v242 = vshrl.u32 %v241, 7
        %v243 = vsub.s32 0, %v242
        %v244 = vrot.slane %v239, %v243
        %v245 = vlaneseq
        %v246 = vshrl.u32 %v245, 7
        %v247 = vsub.s32 1, %v246
        %v248 = vrot.slane %v239, %v247
        %v255 = vunpack.c.l.b16 %v227
        %v256 = vunpack.c.l.b16 %v228
        %v257 = vunpack.c.l.b16 %v229
        %v258 = vunpack.c.l.b16 %v230
        %v259 = vpack.c.b16 %v256, %v255
        %v260 = vpack.c.b16 %v258, %v257
        %v269 = vunpack.c.l.b16 %v231
        %v270 = vunpack.c.h.b16 %v231
        %v271 = vunpack.c.l.b16 %v232
        %v272 = vunpack.c.h.b16 %v232
        %v273 = vunpack.c.l.b16 %v233
        %v274 = vunpack.c.h.b16 %v233
        %v275 = vunpack.c.l.b16 %v234
        %v276 = vunpack.c.h.b16 %v234
        %v277 = vunpack.c.l.b16 %v235
        %v278 = vunpack.c.h.b16 %v235
        %v279 = vunpack.c.l.b16 %v236
        %v280 = vunpack.c.h.b16 %v236
        %v281 = vunpack.c.l.b16 %v237
        %v282 = vunpack.c.h.b16 %v237
        %v283 = vunpack.c.l.b16 %v238
        %v284 = vunpack.c.h.b16 %v238
        %v285 = vpack.c.b16 %v271, %v269
        %v286 = vpack.c.b16 %v272, %v270
        %v287 = vpack.c.b16 %v275, %v273
        %v288 = vpack.c.b16 %v276, %v274
        %v289 = vpack.c.b16 %v279, %v277
        %v290 = vpack.c.b16 %v280, %v278
        %v291 = vpack.c.b16 %v283, %v281
        %v292 = vpack.c.b16 %v284, %v282
        %vm301 = vcmask 523264
        %v303 = vsel %vm301, %v259, 0
        %v306 = vsel %vm301, %v260, 0
        %308 = vmatprep.subr.bf16.mxu0 0
        %309 = vmatpush1.bf16.msra.mxu0 0
        %310 = vmatprep.subr.bf16.mxu0 0
        %311 = vmatpush1.bf16.msra.mxu0 0
        %312 = vmatprep.subr.bf16.mxu0 0
        %313 = vmatpush1.bf16.msra.mxu0 0
        %314 = vmatprep.subr.bf16.mxu0 0
        %315 = vmatpush1.bf16.msra.mxu0 0
        %316 = vmatprep.subr.bf16.mxu0 %v292
        %317 = vmatpush1.bf16.msra.mxu0 %v291
        %318 = vmatprep.subr.bf16.mxu0 %v290
        %319 = vmatpush1.bf16.msra.mxu0 %v289
        %320 = vmatprep.subr.bf16.mxu0 %v288
        %321 = vmatpush1.bf16.msra.mxu0 %v287
        %322 = vmatprep.subr.bf16.mxu0 %v286
        %323 = vmatpush1.bf16.msra.mxu0 %v285
        %324 = vmatprep.subr.bf16.mxu0 0
        %325 = vmatpush2.bf16.msra.mxu0 0
        %326 = vmatprep.subr.bf16.mxu0 0
        %327 = vmatpush2.bf16.msra.mxu0 0
        %328 = vmatprep.subr.bf16.mxu0 0
        %329 = vmatpush2.bf16.msra.mxu0 0
        %330 = vmatprep.subr.bf16.mxu0 0
        %331 = vmatpush2.bf16.msra.mxu0 0
        %332 = vmatprep.subr.bf16.mxu0 0
        %333 = vmatpush2.bf16.msra.mxu0 0
        %334 = vmatprep.subr.bf16.mxu0 0
        %335 = vmatpush2.bf16.msra.mxu0 0
        %336 = vmatprep.subr.bf16.mxu0 0
        %337 = vmatpush2.bf16.msra.mxu0 0
        %338 = vmatprep.subr.bf16.mxu0 0
        %339 = vmatpush2.bf16.msra.mxu0 0
        %340 = vmatprep.mubr.bf16.mxu0 0
        %341 = vmatmul.mubr.bf16.gmra.mxu0 %v303
        %v342 = vpop.f32.mrf.mxu0
        %v343 = vadd.f32 %v244, %v342
        %v344 = vpop.f32.mrf.mxu0
        %v345 = vadd.f32 %v248, %v344
        %v346 = vpop.f32.mrf.mxu0
        %v347 = vadd.f32 %v244, %v346
        %v348 = vpop.f32.mrf.mxu0
        %v349 = vadd.f32 %v248, %v348
        %350 = vmatprep.mubr.bf16.mxu0 0
        %351 = vmatmul.mubr.bf16.gmra.mxu0 %v306
        %v352 = vpop.f32.mrf.mxu0
        %v353 = vadd.f32 %v244, %v352
        %v354 = vpop.f32.mrf.mxu0
        %v355 = vadd.f32 %v248, %v354
        %v356 = vpop.f32.mrf.mxu0
        %v357 = vadd.f32 %v244, %v356
        %v358 = vpop.f32.mrf.mxu0
        %v359 = vadd.f32 %v248, %v358
        %360 = vdwg.mxu0
        %vm361 = vcmp.gt.f32.partialorder %v343, 0.0
        %vm362 = vcmp.gt.f32.partialorder %v345, 0.0
        %vm363 = vcmp.gt.f32.partialorder %v347, 0.0
        %vm364 = vcmp.gt.f32.partialorder %v349, 0.0
        %vm365 = vcmp.gt.f32.partialorder %v353, 0.0
        %vm366 = vcmp.gt.f32.partialorder %v355, 0.0
        %vm367 = vcmp.gt.f32.partialorder %v357, 0.0
        %vm368 = vcmp.gt.f32.partialorder %v359, 0.0
        %v369 = vmul.f32 %v343, 0.1
        %v370 = vmul.f32 %v345, 0.1
        %v371 = vmul.f32 %v347, 0.1
        %v372 = vmul.f32 %v349, 0.1
        %v373 = vmul.f32 %v353, 0.1
        %v374 = vmul.f32 %v355, 0.1
        %v375 = vmul.f32 %v357, 0.1
        %v376 = vmul.f32 %v359, 0.1
        %v377 = vsel %vm361, %v343, %v369
        %v378 = vsel %vm362, %v345, %v370
        %v379 = vsel %vm363, %v347, %v371
        %v380 = vsel %vm364, %v349, %v372
        %v381 = vsel %vm365, %v353, %v373
        %v382 = vsel %vm366, %v355, %v374
        %v383 = vsel %vm367, %v357, %v375
        %v384 = vsel %vm368, %v359, %v376
        %v385 = vpack.c.bf16 %v379, %v377
        %v386 = vpack.c.bf16 %v380, %v378
        %v387 = vpack.c.bf16 %v383, %v381
        %v388 = vpack.c.bf16 %v384, %v382
        %v389 = vld [vmem:[%s3] sm:$0xff]
        %v390 = vld [vmem:[%s3 + $0x8] sm:$0xff]
        %v391 = vld [vmem:[%s3 + $0x10] sm:$0xff]
        %v392 = vld [vmem:[%s3 + $0x18] sm:$0xf]
        %v393 = vld [vmem:[%s3 + $0x1c] sm:$0xff]
        %v394 = vld [vmem:[%s3 + $0x24] sm:$0xff]
        %v395 = vld [vmem:[%s3 + $0x2c] sm:$0xff]
        %v396 = vld [vmem:[%s3 + $0x34] sm:$0xf]
        %v397 = vld [vmem:[%s3 + $0x38] sm:$0xff]
        %v398 = vld [vmem:[%s3 + $0x40] sm:$0xff]
        %v399 = vld [vmem:[%s3 + $0x48] sm:$0xff]
        %v400 = vld [vmem:[%s3 + $0x50] sm:$0xf]
        %v401 = vld [vmem:[%s3 + $0x54] sm:$0xff]
        %v402 = vld [vmem:[%s3 + $0x5c] sm:$0xff]
        %v403 = vld [vmem:[%s3 + $0x64] sm:$0xff]
        %v404 = vld [vmem:[%s3 + $0x6c] sm:$0xf]
        %v405 = vld [vmem:[%s3 + $0x70] sm:$0xff]
        %v406 = vld [vmem:[%s3 + $0x78] sm:$0xff]
        %v407 = vld [vmem:[%s3 + $0x80] sm:$0xff]
        %v408 = vld [vmem:[%s3 + $0x88] sm:$0xf]
        %v409 = vld [vmem:[%s3 + $0x8c] sm:$0xff]
        %v410 = vld [vmem:[%s3 + $0x94] sm:$0xff]
        %v411 = vld [vmem:[%s3 + $0x9c] sm:$0xff]
        %v412 = vld [vmem:[%s3 + $0xa4] sm:$0xf]
        %v413 = vld [vmem:[%s3 + $0xa8] sm:$0xff]
        %v414 = vld [vmem:[%s3 + $0xb0] sm:$0xff]
        %v415 = vld [vmem:[%s3 + $0xb8] sm:$0xff]
        %v416 = vld [vmem:[%s3 + $0xc0] sm:$0xf]
        %v417 = vld [vmem:[%s3 + $0xc4] sm:$0xff]
        %v418 = vld [vmem:[%s3 + $0xcc] sm:$0xff]
        %v419 = vld [vmem:[%s3 + $0xd4] sm:$0xff]
        %v420 = vld [vmem:[%s3 + $0xdc] sm:$0xf]
        %v421 = vld [vmem:[%s3 + $0xe0] sm:$0xff]
        %v422 = vld [vmem:[%s3 + $0xe8] sm:$0xff]
        %v423 = vld [vmem:[%s3 + $0xf0] sm:$0xff]
        %v424 = vld [vmem:[%s3 + $0xf8] sm:$0xf]
        %v425 = vld [vmem:[%s3 + $0xfc] sm:$0xff]
        %v426 = vld [vmem:[%s3 + $0x104] sm:$0xff]
        %v427 = vld [vmem:[%s3 + $0x10c] sm:$0xff]
        %v428 = vld [vmem:[%s3 + $0x114] sm:$0xf]
        %v429 = vld [vmem:[%s3 + $0x118] sm:$0xff]
        %v430 = vld [vmem:[%s3 + $0x120] sm:$0xff]
        %v431 = vld [vmem:[%s3 + $0x128] sm:$0xff]
        %v432 = vld [vmem:[%s3 + $0x130] sm:$0xf]
        %v433 = vld [vmem:[%s3 + $0x134] sm:$0xff]
        %v434 = vld [vmem:[%s3 + $0x13c] sm:$0xff]
        %v435 = vld [vmem:[%s3 + $0x144] sm:$0xff]
        %v436 = vld [vmem:[%s3 + $0x14c] sm:$0xf]
        %v437 = vld [vmem:[%s3 + $0x150] sm:$0xff]
        %v438 = vld [vmem:[%s3 + $0x158] sm:$0xff]
        %v439 = vld [vmem:[%s3 + $0x160] sm:$0xff]
        %v440 = vld [vmem:[%s3 + $0x168] sm:$0xf]
        %v441 = vld [vmem:[%s3 + $0x16c] sm:$0xff]
        %v442 = vld [vmem:[%s3 + $0x174] sm:$0xff]
        %v443 = vld [vmem:[%s3 + $0x17c] sm:$0xff]
        %v444 = vld [vmem:[%s3 + $0x184] sm:$0xf]
        %v445 = vld [vmem:[%s3 + $0x188] sm:$0xff]
        %v446 = vld [vmem:[%s3 + $0x190] sm:$0xff]
        %v447 = vld [vmem:[%s3 + $0x198] sm:$0xff]
        %v448 = vld [vmem:[%s3 + $0x1a0] sm:$0xf]
        %v449 = vld [vmem:[%s3 + $0x1a4] sm:$0xff]
        %v450 = vld [vmem:[%s3 + $0x1ac] sm:$0xff]
        %v451 = vld [vmem:[%s3 + $0x1b4] sm:$0xff]
        %v452 = vld [vmem:[%s3 + $0x1bc] sm:$0xf]
        %v453 = vld [vmem:[%s3 + $0x1c0] sm:$0xff]
        %v454 = vld [vmem:[%s3 + $0x1c8] sm:$0xff]
        %v455 = vld [vmem:[%s3 + $0x1d0] sm:$0xff]
        %v456 = vld [vmem:[%s3 + $0x1d8] sm:$0xf]
        %v457 = vld [vmem:[%s3 + $0x1dc] sm:$0xff]
        %v458 = vld [vmem:[%s3 + $0x1e4] sm:$0xff]
        %v459 = vld [vmem:[%s3 + $0x1ec] sm:$0xff]
        %v460 = vld [vmem:[%s3 + $0x1f4] sm:$0xf]
        %v461 = vld [vmem:[%s3 + $0x1f8] sm:$0xff]
        %v462 = vld [vmem:[%s3 + $0x200] sm:$0xff]
        %v463 = vld [vmem:[%s3 + $0x208] sm:$0xff]
        %v464 = vld [vmem:[%s3 + $0x210] sm:$0xf]
        %v465 = vld [vmem:[%s3 + $0x214] sm:$0xff]
        %v466 = vld [vmem:[%s3 + $0x21c] sm:$0xff]
        %v467 = vld [vmem:[%s3 + $0x224] sm:$0xff]
        %v468 = vld [vmem:[%s3 + $0x22c] sm:$0xf]
        %v469 = vld [vmem:[%s3 + $0x230] sm:$0xff]
        %v470 = vld [vmem:[%s3 + $0x238] sm:$0xff]
        %v471 = vld [vmem:[%s3 + $0x240] sm:$0xff]
        %v472 = vld [vmem:[%s3 + $0x248] sm:$0xf]
        %v473 = vld [vmem:[%s3 + $0x24c] sm:$0xff]
        %v474 = vld [vmem:[%s3 + $0x254] sm:$0xff]
        %v475 = vld [vmem:[%s3 + $0x25c] sm:$0xff]
        %v476 = vld [vmem:[%s3 + $0x264] sm:$0xf]
        %v477 = vld [vmem:[%s3 + $0x268] sm:$0xff]
        %v478 = vld [vmem:[%s3 + $0x270] sm:$0xff]
        %v479 = vld [vmem:[%s3 + $0x278] sm:$0xff]
        %v480 = vld [vmem:[%s3 + $0x280] sm:$0xf]
        %v481 = vld [vmem:[%s3 + $0x284] sm:$0xff]
        %v482 = vld [vmem:[%s3 + $0x28c] sm:$0xff]
        %v483 = vld [vmem:[%s3 + $0x294] sm:$0xff]
        %v484 = vld [vmem:[%s3 + $0x29c] sm:$0xf]
        %v485 = vld [vmem:[%s3 + $0x2a0] sm:$0xff]
        %v486 = vld [vmem:[%s3 + $0x2a8] sm:$0xff]
        %v487 = vld [vmem:[%s3 + $0x2b0] sm:$0xff]
        %v488 = vld [vmem:[%s3 + $0x2b8] sm:$0xf]
        %v489 = vld [vmem:[%s3 + $0x2bc] sm:$0xff]
        %v490 = vld [vmem:[%s3 + $0x2c4] sm:$0xff]
        %v491 = vld [vmem:[%s3 + $0x2cc] sm:$0xff]
        %v492 = vld [vmem:[%s3 + $0x2d4] sm:$0xf]
        %v493 = vld [vmem:[%s3 + $0x2d8] sm:$0xff]
        %v494 = vld [vmem:[%s3 + $0x2e0] sm:$0xff]
        %v495 = vld [vmem:[%s3 + $0x2e8] sm:$0xff]
        %v496 = vld [vmem:[%s3 + $0x2f0] sm:$0xf]
        %v497 = vld [vmem:[%s3 + $0x2f4] sm:$0xff]
        %v498 = vld [vmem:[%s3 + $0x2fc] sm:$0xff]
        %v499 = vld [vmem:[%s3 + $0x304] sm:$0xff]
        %v500 = vld [vmem:[%s3 + $0x30c] sm:$0xf]
        %v501 = vld [vmem:[%s3 + $0x310] sm:$0xff]
        %v502 = vld [vmem:[%s3 + $0x318] sm:$0xff]
        %v503 = vld [vmem:[%s3 + $0x320] sm:$0xff]
        %v504 = vld [vmem:[%s3 + $0x328] sm:$0xf]
        %v505 = vld [vmem:[%s3 + $0x32c] sm:$0xff]
        %v506 = vld [vmem:[%s3 + $0x334] sm:$0xff]
        %v507 = vld [vmem:[%s3 + $0x33c] sm:$0xff]
        %v508 = vld [vmem:[%s3 + $0x344] sm:$0xf]
        %v509 = vld [vmem:[%s3 + $0x348] sm:$0xff]
        %v510 = vld [vmem:[%s3 + $0x350] sm:$0xff]
        %v511 = vld [vmem:[%s3 + $0x358] sm:$0xff]
        %v512 = vld [vmem:[%s3 + $0x360] sm:$0xf]
        %v513 = vld [vmem:[%s3 + $0x364] sm:$0xff]
        %v514 = vld [vmem:[%s3 + $0x36c] sm:$0xff]
        %v515 = vld [vmem:[%s3 + $0x374] sm:$0xff]
        %v516 = vld [vmem:[%s3 + $0x37c] sm:$0xf]
        %v517 = vld [vmem:[%s4] sm:$0xff]
        %v519 = vlaneseq
        %v520 = vshrl.u32 %v519, 7
        %v521 = vsub.s32 0, %v520
        %v522 = vrot.slane %v517, %v521
        %v523 = vlaneseq
        %v524 = vshrl.u32 %v523, 7
        %v525 = vsub.s32 1, %v524
        %v526 = vrot.slane %v517, %v525
        %v527 = vlaneseq
        %v528 = vshrl.u32 %v527, 7
        %v529 = vsub.s32 2, %v528
        %v530 = vrot.slane %v517, %v529
        %v531 = vlaneseq
        %v532 = vshrl.u32 %v531, 7
        %v533 = vsub.s32 3, %v532
        %v534 = vrot.slane %v517, %v533
        %v535 = vlaneseq
        %v536 = vshrl.u32 %v535, 7
        %v537 = vsub.s32 4, %v536
        %v538 = vrot.slane %v517, %v537
        %v539 = vlaneseq
        %v540 = vshrl.u32 %v539, 7
        %v541 = vsub.s32 5, %v540
        %v542 = vrot.slane %v517, %v541
        %v543 = vlaneseq
        %v544 = vshrl.u32 %v543, 7
        %v545 = vsub.s32 6, %v544
        %v546 = vrot.slane %v517, %v545
        %v682 = vunpack.c.l.b16 %v389
        %v683 = vunpack.c.h.b16 %v389
        %v684 = vunpack.c.l.b16 %v390
        %v685 = vunpack.c.h.b16 %v390
        %v686 = vunpack.c.l.b16 %v391
        %v687 = vunpack.c.h.b16 %v391
        %v688 = vunpack.c.l.b16 %v392
        %v689 = vunpack.c.l.b16 %v393
        %v690 = vunpack.c.h.b16 %v393
        %v691 = vunpack.c.l.b16 %v394
        %v692 = vunpack.c.h.b16 %v394
        %v693 = vunpack.c.l.b16 %v395
        %v694 = vunpack.c.h.b16 %v395
        %v695 = vunpack.c.l.b16 %v396
        %v696 = vunpack.c.l.b16 %v397
        %v697 = vunpack.c.h.b16 %v397
        %v698 = vunpack.c.l.b16 %v398
        %v699 = vunpack.c.h.b16 %v398
        %v700 = vunpack.c.l.b16 %v399
        %v701 = vunpack.c.h.b16 %v399
        %v702 = vunpack.c.l.b16 %v400
        %v703 = vunpack.c.l.b16 %v401
        %v704 = vunpack.c.h.b16 %v401
        %v705 = vunpack.c.l.b16 %v402
        %v706 = vunpack.c.h.b16 %v402
        %v707 = vunpack.c.l.b16 %v403
        %v708 = vunpack.c.h.b16 %v403
        %v709 = vunpack.c.l.b16 %v404
        %v710 = vunpack.c.l.b16 %v405
        %v711 = vunpack.c.h.b16 %v405
        %v712 = vunpack.c.l.b16 %v406
        %v713 = vunpack.c.h.b16 %v406
        %v714 = vunpack.c.l.b16 %v407
        %v715 = vunpack.c.h.b16 %v407
        %v716 = vunpack.c.l.b16 %v408
        %v717 = vunpack.c.l.b16 %v409
        %v718 = vunpack.c.h.b16 %v409
        %v719 = vunpack.c.l.b16 %v410
        %v720 = vunpack.c.h.b16 %v410
        %v721 = vunpack.c.l.b16 %v411
        %v722 = vunpack.c.h.b16 %v411
        %v723 = vunpack.c.l.b16 %v412
        %v724 = vunpack.c.l.b16 %v413
        %v725 = vunpack.c.h.b16 %v413
        %v726 = vunpack.c.l.b16 %v414
        %v727 = vunpack.c.h.b16 %v414
        %v728 = vunpack.c.l.b16 %v415
        %v729 = vunpack.c.h.b16 %v415
        %v730 = vunpack.c.l.b16 %v416
        %v731 = vunpack.c.l.b16 %v417
        %v732 = vunpack.c.h.b16 %v417
        %v733 = vunpack.c.l.b16 %v418
        %v734 = vunpack.c.h.b16 %v418
        %v735 = vunpack.c.l.b16 %v419
        %v736 = vunpack.c.h.b16 %v419
        %v737 = vunpack.c.l.b16 %v420
        %v738 = vunpack.c.l.b16 %v421
        %v739 = vunpack.c.h.b16 %v421
        %v740 = vunpack.c.l.b16 %v422
        %v741 = vunpack.c.h.b16 %v422
        %v742 = vunpack.c.l.b16 %v423
        %v743 = vunpack.c.h.b16 %v423
        %v744 = vunpack.c.l.b16 %v424
        %v745 = vunpack.c.l.b16 %v425
        %v746 = vunpack.c.h.b16 %v425
        %v747 = vunpack.c.l.b16 %v426
        %v748 = vunpack.c.h.b16 %v426
        %v749 = vunpack.c.l.b16 %v427
        %v750 = vunpack.c.h.b16 %v427
        %v751 = vunpack.c.l.b16 %v428
        %v752 = vunpack.c.l.b16 %v429
        %v753 = vunpack.c.h.b16 %v429
        %v754 = vunpack.c.l.b16 %v430
        %v755 = vunpack.c.h.b16 %v430
        %v756 = vunpack.c.l.b16 %v431
        %v757 = vunpack.c.h.b16 %v431
        %v758 = vunpack.c.l.b16 %v432
        %v759 = vunpack.c.l.b16 %v433
        %v760 = vunpack.c.h.b16 %v433
        %v761 = vunpack.c.l.b16 %v434
        %v762 = vunpack.c.h.b16 %v434
        %v763 = vunpack.c.l.b16 %v435
        %v764 = vunpack.c.h.b16 %v435
        %v765 = vunpack.c.l.b16 %v436
        %v766 = vunpack.c.l.b16 %v437
        %v767 = vunpack.c.h.b16 %v437
        %v768 = vunpack.c.l.b16 %v438
        %v769 = vunpack.c.h.b16 %v438
        %v770 = vunpack.c.l.b16 %v439
        %v771 = vunpack.c.h.b16 %v439
        %v772 = vunpack.c.l.b16 %v440
        %v773 = vunpack.c.l.b16 %v441
        %v774 = vunpack.c.h.b16 %v441
        %v775 = vunpack.c.l.b16 %v442
        %v776 = vunpack.c.h.b16 %v442
        %v777 = vunpack.c.l.b16 %v443
        %v778 = vunpack.c.h.b16 %v443
        %v779 = vunpack.c.l.b16 %v444
        %v780 = vunpack.c.l.b16 %v445
        %v781 = vunpack.c.h.b16 %v445
        %v782 = vunpack.c.l.b16 %v446
        %v783 = vunpack.c.h.b16 %v446
        %v784 = vunpack.c.l.b16 %v447
        %v785 = vunpack.c.h.b16 %v447
        %v786 = vunpack.c.l.b16 %v448
        %v787 = vunpack.c.l.b16 %v449
        %v788 = vunpack.c.h.b16 %v449
        %v789 = vunpack.c.l.b16 %v450
        %v790 = vunpack.c.h.b16 %v450
        %v791 = vunpack.c.l.b16 %v451
        %v792 = vunpack.c.h.b16 %v451
        %v793 = vunpack.c.l.b16 %v452
        %v794 = vunpack.c.l.b16 %v453
        %v795 = vunpack.c.h.b16 %v453
        %v796 = vunpack.c.l.b16 %v454
        %v797 = vunpack.c.h.b16 %v454
        %v798 = vunpack.c.l.b16 %v455
        %v799 = vunpack.c.h.b16 %v455
        %v800 = vunpack.c.l.b16 %v456
        %v801 = vunpack.c.l.b16 %v457
        %v802 = vunpack.c.h.b16 %v457
        %v803 = vunpack.c.l.b16 %v458
        %v804 = vunpack.c.h.b16 %v458
        %v805 = vunpack.c.l.b16 %v459
        %v806 = vunpack.c.h.b16 %v459
        %v807 = vunpack.c.l.b16 %v460
        %v808 = vunpack.c.l.b16 %v461
        %v809 = vunpack.c.h.b16 %v461
        %v810 = vunpack.c.l.b16 %v462
        %v811 = vunpack.c.h.b16 %v462
        %v812 = vunpack.c.l.b16 %v463
        %v813 = vunpack.c.h.b16 %v463
        %v814 = vunpack.c.l.b16 %v464
        %v815 = vunpack.c.l.b16 %v465
        %v816 = vunpack.c.h.b16 %v465
        %v817 = vunpack.c.l.b16 %v466
        %v818 = vunpack.c.h.b16 %v466
        %v819 = vunpack.c.l.b16 %v467
        %v820 = vunpack.c.h.b16 %v467
        %v821 = vunpack.c.l.b16 %v468
        %v822 = vunpack.c.l.b16 %v469
        %v823 = vunpack.c.h.b16 %v469
        %v824 = vunpack.c.l.b16 %v470
        %v825 = vunpack.c.h.b16 %v470
        %v826 = vunpack.c.l.b16 %v471
        %v827 = vunpack.c.h.b16 %v471
        %v828 = vunpack.c.l.b16 %v472
        %v829 = vunpack.c.l.b16 %v473
        %v830 = vunpack.c.h.b16 %v473
        %v831 = vunpack.c.l.b16 %v474
        %v832 = vunpack.c.h.b16 %v474
        %v833 = vunpack.c.l.b16 %v475
        %v834 = vunpack.c.h.b16 %v475
        %v835 = vunpack.c.l.b16 %v476
        %v836 = vunpack.c.l.b16 %v477
        %v837 = vunpack.c.h.b16 %v477
        %v838 = vunpack.c.l.b16 %v478
        %v839 = vunpack.c.h.b16 %v478
        %v840 = vunpack.c.l.b16 %v479
        %v841 = vunpack.c.h.b16 %v479
        %v842 = vunpack.c.l.b16 %v480
        %v843 = vunpack.c.l.b16 %v481
        %v844 = vunpack.c.h.b16 %v481
        %v845 = vunpack.c.l.b16 %v482
        %v846 = vunpack.c.h.b16 %v482
        %v847 = vunpack.c.l.b16 %v483
        %v848 = vunpack.c.h.b16 %v483
        %v849 = vunpack.c.l.b16 %v484
        %v850 = vunpack.c.l.b16 %v485
        %v851 = vunpack.c.h.b16 %v485
        %v852 = vunpack.c.l.b16 %v486
        %v853 = vunpack.c.h.b16 %v486
        %v854 = vunpack.c.l.b16 %v487
        %v855 = vunpack.c.h.b16 %v487
        %v856 = vunpack.c.l.b16 %v488
        %v857 = vunpack.c.l.b16 %v489
        %v858 = vunpack.c.h.b16 %v489
        %v859 = vunpack.c.l.b16 %v490
        %v860 = vunpack.c.h.b16 %v490
        %v861 = vunpack.c.l.b16 %v491
        %v862 = vunpack.c.h.b16 %v491
        %v863 = vunpack.c.l.b16 %v492
        %v864 = vunpack.c.l.b16 %v493
        %v865 = vunpack.c.h.b16 %v493
        %v866 = vunpack.c.l.b16 %v494
        %v867 = vunpack.c.h.b16 %v494
        %v868 = vunpack.c.l.b16 %v495
        %v869 = vunpack.c.h.b16 %v495
        %v870 = vunpack.c.l.b16 %v496
        %v871 = vunpack.c.l.b16 %v497
        %v872 = vunpack.c.h.b16 %v497
        %v873 = vunpack.c.l.b16 %v498
        %v874 = vunpack.c.h.b16 %v498
        %v875 = vunpack.c.l.b16 %v499
        %v876 = vunpack.c.h.b16 %v499
        %v877 = vunpack.c.l.b16 %v500
        %v878 = vunpack.c.l.b16 %v501
        %v879 = vunpack.c.h.b16 %v501
        %v880 = vunpack.c.l.b16 %v502
        %v881 = vunpack.c.h.b16 %v502
        %v882 = vunpack.c.l.b16 %v503
        %v883 = vunpack.c.h.b16 %v503
        %v884 = vunpack.c.l.b16 %v504
        %v885 = vunpack.c.l.b16 %v505
        %v886 = vunpack.c.h.b16 %v505
        %v887 = vunpack.c.l.b16 %v506
        %v888 = vunpack.c.h.b16 %v506
        %v889 = vunpack.c.l.b16 %v507
        %v890 = vunpack.c.h.b16 %v507
        %v891 = vunpack.c.l.b16 %v508
        %v892 = vunpack.c.l.b16 %v509
        %v893 = vunpack.c.h.b16 %v509
        %v894 = vunpack.c.l.b16 %v510
        %v895 = vunpack.c.h.b16 %v510
        %v896 = vunpack.c.l.b16 %v511
        %v897 = vunpack.c.h.b16 %v511
        %v898 = vunpack.c.l.b16 %v512
        %v899 = vunpack.c.l.b16 %v513
        %v900 = vunpack.c.h.b16 %v513
        %v901 = vunpack.c.l.b16 %v514
        %v902 = vunpack.c.h.b16 %v514
        %v903 = vunpack.c.l.b16 %v515
        %v904 = vunpack.c.h.b16 %v515
        %v905 = vunpack.c.l.b16 %v516
        %v906 = vpack.c.b16 %v689, %v682
        %v907 = vpack.c.b16 %v690, %v683
        %v908 = vpack.c.b16 %v691, %v684
        %v909 = vpack.c.b16 %v692, %v685
        %v910 = vpack.c.b16 %v693, %v686
        %v911 = vpack.c.b16 %v694, %v687
        %v912 = vpack.c.b16 %v695, %v688
        %v913 = vpack.c.b16 %v703, %v696
        %v914 = vpack.c.b16 %v704, %v697
        %v915 = vpack.c.b16 %v705, %v698
        %v916 = vpack.c.b16 %v706, %v699
        %v917 = vpack.c.b16 %v707, %v700
        %v918 = vpack.c.b16 %v708, %v701
        %v919 = vpack.c.b16 %v709, %v702
        %v920 = vpack.c.b16 %v717, %v710
        %v921 = vpack.c.b16 %v718, %v711
        %v922 = vpack.c.b16 %v719, %v712
        %v923 = vpack.c.b16 %v720, %v713
        %v924 = vpack.c.b16 %v721, %v714
        %v925 = vpack.c.b16 %v722, %v715
        %v926 = vpack.c.b16 %v723, %v716
        %v927 = vpack.c.b16 %v731, %v724
        %v928 = vpack.c.b16 %v732, %v725
        %v929 = vpack.c.b16 %v733, %v726
        %v930 = vpack.c.b16 %v734, %v727
        %v931 = vpack.c.b16 %v735, %v728
        %v932 = vpack.c.b16 %v736, %v729
        %v933 = vpack.c.b16 %v737, %v730
        %v934 = vpack.c.b16 %v745, %v738
        %v935 = vpack.c.b16 %v746, %v739
        %v936 = vpack.c.b16 %v747, %v740
        %v937 = vpack.c.b16 %v748, %v741
        %v938 = vpack.c.b16 %v749, %v742
        %v939 = vpack.c.b16 %v750, %v743
        %v940 = vpack.c.b16 %v751, %v744
        %v941 = vpack.c.b16 %v759, %v752
        %v942 = vpack.c.b16 %v760, %v753
        %v943 = vpack.c.b16 %v761, %v754
        %v944 = vpack.c.b16 %v762, %v755
        %v945 = vpack.c.b16 %v763, %v756
        %v946 = vpack.c.b16 %v764, %v757
        %v947 = vpack.c.b16 %v765, %v758
        %v948 = vpack.c.b16 %v773, %v766
        %v949 = vpack.c.b16 %v774, %v767
        %v950 = vpack.c.b16 %v775, %v768
        %v951 = vpack.c.b16 %v776, %v769
        %v952 = vpack.c.b16 %v777, %v770
        %v953 = vpack.c.b16 %v778, %v771
        %v954 = vpack.c.b16 %v779, %v772
        %v955 = vpack.c.b16 %v787, %v780
        %v956 = vpack.c.b16 %v788, %v781
        %v957 = vpack.c.b16 %v789, %v782
        %v958 = vpack.c.b16 %v790, %v783
        %v959 = vpack.c.b16 %v791, %v784
        %v960 = vpack.c.b16 %v792, %v785
        %v961 = vpack.c.b16 %v793, %v786
        %v962 = vpack.c.b16 %v801, %v794
        %v963 = vpack.c.b16 %v802, %v795
        %v964 = vpack.c.b16 %v803, %v796
        %v965 = vpack.c.b16 %v804, %v797
        %v966 = vpack.c.b16 %v805, %v798
        %v967 = vpack.c.b16 %v806, %v799
        %v968 = vpack.c.b16 %v807, %v800
        %v969 = vpack.c.b16 %v815, %v808
        %v970 = vpack.c.b16 %v816, %v809
        %v971 = vpack.c.b16 %v817, %v810
        %v972 = vpack.c.b16 %v818, %v811
        %v973 = vpack.c.b16 %v819, %v812
        %v974 = vpack.c.b16 %v820, %v813
        %v975 = vpack.c.b16 %v821, %v814
        %v976 = vpack.c.b16 %v829, %v822
        %v977 = vpack.c.b16 %v830, %v823
        %v978 = vpack.c.b16 %v831, %v824
        %v979 = vpack.c.b16 %v832, %v825
        %v980 = vpack.c.b16 %v833, %v826
        %v981 = vpack.c.b16 %v834, %v827
        %v982 = vpack.c.b16 %v835, %v828
        %v983 = vpack.c.b16 %v843, %v836
        %v984 = vpack.c.b16 %v844, %v837
        %v985 = vpack.c.b16 %v845, %v838
        %v986 = vpack.c.b16 %v846, %v839
        %v987 = vpack.c.b16 %v847, %v840
        %v988 = vpack.c.b16 %v848, %v841
        %v989 = vpack.c.b16 %v849, %v842
        %v990 = vpack.c.b16 %v857, %v850
        %v991 = vpack.c.b16 %v858, %v851
        %v992 = vpack.c.b16 %v859, %v852
        %v993 = vpack.c.b16 %v860, %v853
        %v994 = vpack.c.b16 %v861, %v854
        %v995 = vpack.c.b16 %v862, %v855
        %v996 = vpack.c.b16 %v863, %v856
        %v997 = vpack.c.b16 %v871, %v864
        %v998 = vpack.c.b16 %v872, %v865
        %v999 = vpack.c.b16 %v873, %v866
        %v1000 = vpack.c.b16 %v874, %v867
        %v1001 = vpack.c.b16 %v875, %v868
        %v1002 = vpack.c.b16 %v876, %v869
        %v1003 = vpack.c.b16 %v877, %v870
        %v1004 = vpack.c.b16 %v885, %v878
        %v1005 = vpack.c.b16 %v886, %v879
        %v1006 = vpack.c.b16 %v887, %v880
        %v1007 = vpack.c.b16 %v888, %v881
        %v1008 = vpack.c.b16 %v889, %v882
        %v1009 = vpack.c.b16 %v890, %v883
        %v1010 = vpack.c.b16 %v891, %v884
        %v1011 = vpack.c.b16 %v899, %v892
        %v1012 = vpack.c.b16 %v900, %v893
        %v1013 = vpack.c.b16 %v901, %v894
        %v1014 = vpack.c.b16 %v902, %v895
        %v1015 = vpack.c.b16 %v903, %v896
        %v1016 = vpack.c.b16 %v904, %v897
        %v1017 = vpack.c.b16 %v905, %v898
        %1130 = vmatprep.subr.bf16.mxu0 %v956
        %1131 = vmatpush1.bf16.msra.mxu0 %v955
        %1132 = vmatprep.subr.bf16.mxu0 %v949
        %1133 = vmatpush1.bf16.msra.mxu0 %v948
        %1134 = vmatprep.subr.bf16.mxu0 %v942
        %1135 = vmatpush1.bf16.msra.mxu0 %v941
        %1136 = vmatprep.subr.bf16.mxu0 %v935
        %1137 = vmatpush1.bf16.msra.mxu0 %v934
        %1138 = vmatprep.subr.bf16.mxu0 %v928
        %1139 = vmatpush1.bf16.msra.mxu0 %v927
        %1140 = vmatprep.subr.bf16.mxu0 %v921
        %1141 = vmatpush1.bf16.msra.mxu0 %v920
        %1142 = vmatprep.subr.bf16.mxu0 %v914
        %1143 = vmatpush1.bf16.msra.mxu0 %v913
        %1144 = vmatprep.subr.bf16.mxu0 %v907
        %1145 = vmatpush1.bf16.msra.mxu0 %v906
        %1146 = vmatprep.subr.bf16.mxu0 %v1012
        %1147 = vmatpush2.bf16.msra.mxu0 %v1011
        %1148 = vmatprep.subr.bf16.mxu0 %v1005
        %1149 = vmatpush2.bf16.msra.mxu0 %v1004
        %1150 = vmatprep.subr.bf16.mxu0 %v998
        %1151 = vmatpush2.bf16.msra.mxu0 %v997
        %1152 = vmatprep.subr.bf16.mxu0 %v991
        %1153 = vmatpush2.bf16.msra.mxu0 %v990
        %1154 = vmatprep.subr.bf16.mxu0 %v984
        %1155 = vmatpush2.bf16.msra.mxu0 %v983
        %1156 = vmatprep.subr.bf16.mxu0 %v977
        %1157 = vmatpush2.bf16.msra.mxu0 %v976
        %1158 = vmatprep.subr.bf16.mxu0 %v970
        %1159 = vmatpush2.bf16.msra.mxu0 %v969
        %1160 = vmatprep.subr.bf16.mxu0 %v963
        %1161 = vmatpush2.bf16.msra.mxu0 %v962
        %1162 = vmatprep.mubr.bf16.mxu0 %v386
        %1163 = vmatmul.mubr.bf16.gmra.mxu0 %v385
        %v1164 = vpop.f32.mrf.mxu0
        %v1165 = vadd.f32 %v522, %v1164
        %v1166 = vpop.f32.mrf.mxu0
        %v1167 = vadd.f32 %v526, %v1166
        %v1168 = vpop.f32.mrf.mxu0
        %v1169 = vadd.f32 %v522, %v1168
        %v1170 = vpop.f32.mrf.mxu0
        %v1171 = vadd.f32 %v526, %v1170
        %1172 = vmatprep.mubr.bf16.mxu0 %v388
        %1173 = vmatmul.mubr.bf16.gmra.mxu0 %v387
        %v1174 = vpop.f32.mrf.mxu0
        %v1175 = vadd.f32 %v522, %v1174
        %v1176 = vpop.f32.mrf.mxu0
        %v1177 = vadd.f32 %v526, %v1176
        %v1178 = vpop.f32.mrf.mxu0
        %v1179 = vadd.f32 %v522, %v1178
        %v1180 = vpop.f32.mrf.mxu0
        %v1181 = vadd.f32 %v526, %v1180
        %1182 = vdwg.mxu0
        %1183 = vmatprep.subr.bf16.mxu0 %v958
        %1184 = vmatpush1.bf16.msra.mxu0 %v957
        %1185 = vmatprep.subr.bf16.mxu0 %v951
        %1186 = vmatpush1.bf16.msra.mxu0 %v950
        %1187 = vmatprep.subr.bf16.mxu0 %v944
        %1188 = vmatpush1.bf16.msra.mxu0 %v943
        %1189 = vmatprep.subr.bf16.mxu0 %v937
        %1190 = vmatpush1.bf16.msra.mxu0 %v936
        %1191 = vmatprep.subr.bf16.mxu0 %v930
        %1192 = vmatpush1.bf16.msra.mxu0 %v929
        %1193 = vmatprep.subr.bf16.mxu0 %v923
        %1194 = vmatpush1.bf16.msra.mxu0 %v922
        %1195 = vmatprep.subr.bf16.mxu0 %v916
        %1196 = vmatpush1.bf16.msra.mxu0 %v915
        %1197 = vmatprep.subr.bf16.mxu0 %v909
        %1198 = vmatpush1.bf16.msra.mxu0 %v908
        %1199 = vmatprep.subr.bf16.mxu0 %v1014
        %1200 = vmatpush2.bf16.msra.mxu0 %v1013
        %1201 = vmatprep.subr.bf16.mxu0 %v1007
        %1202 = vmatpush2.bf16.msra.mxu0 %v1006
        %1203 = vmatprep.subr.bf16.mxu0 %v1000
        %1204 = vmatpush2.bf16.msra.mxu0 %v999
        %1205 = vmatprep.subr.bf16.mxu0 %v993
        %1206 = vmatpush2.bf16.msra.mxu0 %v992
        %1207 = vmatprep.subr.bf16.mxu0 %v986
        %1208 = vmatpush2.bf16.msra.mxu0 %v985
        %1209 = vmatprep.subr.bf16.mxu0 %v979
        %1210 = vmatpush2.bf16.msra.mxu0 %v978
        %1211 = vmatprep.subr.bf16.mxu0 %v972
        %1212 = vmatpush2.bf16.msra.mxu0 %v971
        %1213 = vmatprep.subr.bf16.mxu0 %v965
        %1214 = vmatpush2.bf16.msra.mxu0 %v964
        %1215 = vmatprep.mubr.bf16.mxu0 %v386
        %1216 = vmatmul.mubr.bf16.gmra.mxu0 %v385
        %v1217 = vpop.f32.mrf.mxu0
        %v1218 = vadd.f32 %v530, %v1217
        %v1219 = vpop.f32.mrf.mxu0
        %v1220 = vadd.f32 %v534, %v1219
        %v1221 = vpop.f32.mrf.mxu0
        %v1222 = vadd.f32 %v530, %v1221
        %v1223 = vpop.f32.mrf.mxu0
        %v1224 = vadd.f32 %v534, %v1223
        %1225 = vmatprep.mubr.bf16.mxu0 %v388
        %1226 = vmatmul.mubr.bf16.gmra.mxu0 %v387
        %v1227 = vpop.f32.mrf.mxu0
        %v1228 = vadd.f32 %v530, %v1227
        %v1229 = vpop.f32.mrf.mxu0
        %v1230 = vadd.f32 %v534, %v1229
        %v1231 = vpop.f32.mrf.mxu0
        %v1232 = vadd.f32 %v530, %v1231
        %v1233 = vpop.f32.mrf.mxu0
        %v1234 = vadd.f32 %v534, %v1233
        %1235 = vdwg.mxu0
        %1236 = vmatprep.subr.bf16.mxu0 %v960
        %1237 = vmatpush1.bf16.msra.mxu0 %v959
        %1238 = vmatprep.subr.bf16.mxu0 %v953
        %1239 = vmatpush1.bf16.msra.mxu0 %v952
        %1240 = vmatprep.subr.bf16.mxu0 %v946
        %1241 = vmatpush1.bf16.msra.mxu0 %v945
        %1242 = vmatprep.subr.bf16.mxu0 %v939
        %1243 = vmatpush1.bf16.msra.mxu0 %v938
        %1244 = vmatprep.subr.bf16.mxu0 %v932
        %1245 = vmatpush1.bf16.msra.mxu0 %v931
        %1246 = vmatprep.subr.bf16.mxu0 %v925
        %1247 = vmatpush1.bf16.msra.mxu0 %v924
        %1248 = vmatprep.subr.bf16.mxu0 %v918
        %1249 = vmatpush1.bf16.msra.mxu0 %v917
        %1250 = vmatprep.subr.bf16.mxu0 %v911
        %1251 = vmatpush1.bf16.msra.mxu0 %v910
        %1252 = vmatprep.subr.bf16.mxu0 %v1016
        %1253 = vmatpush2.bf16.msra.mxu0 %v1015
        %1254 = vmatprep.subr.bf16.mxu0 %v1009
        %1255 = vmatpush2.bf16.msra.mxu0 %v1008
        %1256 = vmatprep.subr.bf16.mxu0 %v1002
        %1257 = vmatpush2.bf16.msra.mxu0 %v1001
        %1258 = vmatprep.subr.bf16.mxu0 %v995
        %1259 = vmatpush2.bf16.msra.mxu0 %v994
        %1260 = vmatprep.subr.bf16.mxu0 %v988
        %1261 = vmatpush2.bf16.msra.mxu0 %v987
        %1262 = vmatprep.subr.bf16.mxu0 %v981
        %1263 = vmatpush2.bf16.msra.mxu0 %v980
        %1264 = vmatprep.subr.bf16.mxu0 %v974
        %1265 = vmatpush2.bf16.msra.mxu0 %v973
        %1266 = vmatprep.subr.bf16.mxu0 %v967
        %1267 = vmatpush2.bf16.msra.mxu0 %v966
        %1268 = vmatprep.mubr.bf16.mxu0 %v386
        %1269 = vmatmul.mubr.bf16.gmra.mxu0 %v385
        %v1270 = vpop.f32.mrf.mxu0
        %v1271 = vadd.f32 %v538, %v1270
        %v1272 = vpop.f32.mrf.mxu0
        %v1273 = vadd.f32 %v542, %v1272
        %v1274 = vpop.f32.mrf.mxu0
        %v1275 = vadd.f32 %v538, %v1274
        %v1276 = vpop.f32.mrf.mxu0
        %v1277 = vadd.f32 %v542, %v1276
        %1278 = vmatprep.mubr.bf16.mxu0 %v388
        %1279 = vmatmul.mubr.bf16.gmra.mxu0 %v387
        %v1280 = vpop.f32.mrf.mxu0
        %v1281 = vadd.f32 %v538, %v1280
        %v1282 = vpop.f32.mrf.mxu0
        %v1283 = vadd.f32 %v542, %v1282
        %v1284 = vpop.f32.mrf.mxu0
        %v1285 = vadd.f32 %v538, %v1284
        %v1286 = vpop.f32.mrf.mxu0
        %v1287 = vadd.f32 %v542, %v1286
        %1288 = vdwg.mxu0
        %1289 = vmatprep.subr.bf16.mxu0 0
        %1290 = vmatpush1.bf16.msra.mxu0 %v961
        %1291 = vmatprep.subr.bf16.mxu0 0
        %1292 = vmatpush1.bf16.msra.mxu0 %v954
        %1293 = vmatprep.subr.bf16.mxu0 0
        %1294 = vmatpush1.bf16.msra.mxu0 %v947
        %1295 = vmatprep.subr.bf16.mxu0 0
        %1296 = vmatpush1.bf16.msra.mxu0 %v940
        %1297 = vmatprep.subr.bf16.mxu0 0
        %1298 = vmatpush1.bf16.msra.mxu0 %v933
        %1299 = vmatprep.subr.bf16.mxu0 0
        %1300 = vmatpush1.bf16.msra.mxu0 %v926
        %1301 = vmatprep.subr.bf16.mxu0 0
        %1302 = vmatpush1.bf16.msra.mxu0 %v919
        %1303 = vmatprep.subr.bf16.mxu0 0
        %1304 = vmatpush1.bf16.msra.mxu0 %v912
        %1305 = vmatprep.subr.bf16.mxu0 0
        %1306 = vmatpush2.bf16.msra.mxu0 %v1017
        %1307 = vmatprep.subr.bf16.mxu0 0
        %1308 = vmatpush2.bf16.msra.mxu0 %v1010
        %1309 = vmatprep.subr.bf16.mxu0 0
        %1310 = vmatpush2.bf16.msra.mxu0 %v1003
        %1311 = vmatprep.subr.bf16.mxu0 0
        %1312 = vmatpush2.bf16.msra.mxu0 %v996
        %1313 = vmatprep.subr.bf16.mxu0 0
        %1314 = vmatpush2.bf16.msra.mxu0 %v989
        %1315 = vmatprep.subr.bf16.mxu0 0
        %1316 = vmatpush2.bf16.msra.mxu0 %v982
        %1317 = vmatprep.subr.bf16.mxu0 0
        %1318 = vmatpush2.bf16.msra.mxu0 %v975
        %1319 = vmatprep.subr.bf16.mxu0 0
        %1320 = vmatpush2.bf16.msra.mxu0 %v968
        %1321 = vmatprep.mubr.bf16.mxu0 %v386
        %1322 = vmatmul.mubr.bf16.gmra.mxu0 %v385
        %v1323 = vpop.f32.mrf.mxu0
        %v1324 = vadd.f32 %v546, %v1323
        %v1325 = vpop.f32.mrf.mxu0
        %v1326 = vpop.f32.mrf.mxu0
        %v1327 = vadd.f32 %v546, %v1326
        %v1328 = vpop.f32.mrf.mxu0
        %1329 = vmatprep.mubr.bf16.mxu0 %v388
        %1330 = vmatmul.mubr.bf16.gmra.mxu0 %v387
        %v1331 = vpop.f32.mrf.mxu0
        %v1332 = vadd.f32 %v546, %v1331
        %v1333 = vpop.f32.mrf.mxu0
        %v1334 = vpop.f32.mrf.mxu0
        %v1335 = vadd.f32 %v546, %v1334
        %v1336 = vpop.f32.mrf.mxu0
        %1337 = vdwg.mxu0
        %v1338 = vtanh.pop %v1165
        %v1339 = vtanh.pop %v1167
        %v1340 = vtanh.pop %v1218
        %v1341 = vtanh.pop %v1220
        %v1342 = vtanh.pop %v1271
        %v1343 = vtanh.pop %v1273
        %v1344 = vtanh.pop %v1324
        %v1345 = vtanh.pop %v1169
        %v1346 = vtanh.pop %v1171
        %v1347 = vtanh.pop %v1222
        %v1348 = vtanh.pop %v1224
        %v1349 = vtanh.pop %v1275
        %v1350 = vtanh.pop %v1277
        %v1351 = vtanh.pop %v1327
        %v1352 = vtanh.pop %v1175
        %v1353 = vtanh.pop %v1177
        %v1354 = vtanh.pop %v1228
        %v1355 = vtanh.pop %v1230
        %v1356 = vtanh.pop %v1281
        %v1357 = vtanh.pop %v1283
        %v1358 = vtanh.pop %v1332
        %v1359 = vtanh.pop %v1179
        %v1360 = vtanh.pop %v1181
        %v1361 = vtanh.pop %v1232
        %v1362 = vtanh.pop %v1234
        %v1363 = vtanh.pop %v1285
        %v1364 = vtanh.pop %v1287
        %v1365 = vtanh.pop %v1335
        %v1366 = vpack.c.bf16 %v1345, %v1338
        %v1367 = vpack.c.bf16 %v1346, %v1339
        %v1368 = vpack.c.bf16 %v1347, %v1340
        %v1369 = vpack.c.bf16 %v1348, %v1341
        %v1370 = vpack.c.bf16 %v1349, %v1342
        %v1371 = vpack.c.bf16 %v1350, %v1343
        %v1372 = vpack.c.bf16 %v1351, %v1344
        %v1373 = vpack.c.bf16 %v1359, %v1352
        %v1374 = vpack.c.bf16 %v1360, %v1353
        %v1375 = vpack.c.bf16 %v1361, %v1354
        %v1376 = vpack.c.bf16 %v1362, %v1355
        %v1377 = vpack.c.bf16 %v1363, %v1356
        %v1378 = vpack.c.bf16 %v1364, %v1357
        %v1379 = vpack.c.bf16 %v1365, %v1358
        %v1394 = vunpack.c.l.b16 %v1366
        %v1395 = vunpack.c.l.b16 %v1367
        %v1396 = vunpack.c.l.b16 %v1368
        %v1397 = vunpack.c.l.b16 %v1369
        %v1398 = vunpack.c.l.b16 %v1370
        %v1399 = vunpack.c.l.b16 %v1371
        %v1400 = vunpack.c.l.b16 %v1372
        %v1401 = vunpack.c.h.b16 %v1366
        %v1402 = vunpack.c.h.b16 %v1367
        %v1403 = vunpack.c.h.b16 %v1368
        %v1404 = vunpack.c.h.b16 %v1369
        %v1405 = vunpack.c.h.b16 %v1370
        %v1406 = vunpack.c.h.b16 %v1371
        %v1407 = vunpack.c.h.b16 %v1372
        %v1408 = vunpack.c.l.b16 %v1373
        %v1409 = vunpack.c.l.b16 %v1374
        %v1410 = vunpack.c.l.b16 %v1375
        %v1411 = vunpack.c.l.b16 %v1376
        %v1412 = vunpack.c.l.b16 %v1377
        %v1413 = vunpack.c.l.b16 %v1378
        %v1414 = vunpack.c.l.b16 %v1379
        %v1415 = vunpack.c.h.b16 %v1373
        %v1416 = vunpack.c.h.b16 %v1374
        %v1417 = vunpack.c.h.b16 %v1375
        %v1418 = vunpack.c.h.b16 %v1376
        %v1419 = vunpack.c.h.b16 %v1377
        %v1420 = vunpack.c.h.b16 %v1378
        %v1421 = vunpack.c.h.b16 %v1379
        %v1422 = vpack.c.b16 %v1395, %v1394
        %v1423 = vpack.c.b16 %v1397, %v1396
        %v1424 = vpack.c.b16 %v1399, %v1398
        %v1425 = vpack.c.b16 %v1400, %v1400
        %v1426 = vpack.c.b16 %v1402, %v1401
        %v1427 = vpack.c.b16 %v1404, %v1403
        %v1428 = vpack.c.b16 %v1406, %v1405
        %v1429 = vpack.c.b16 %v1407, %v1407
        %v1430 = vpack.c.b16 %v1409, %v1408
        %v1431 = vpack.c.b16 %v1411, %v1410
        %v1432 = vpack.c.b16 %v1413, %v1412
        %v1433 = vpack.c.b16 %v1414, %v1414
        %v1434 = vpack.c.b16 %v1416, %v1415
        %v1435 = vpack.c.b16 %v1418, %v1417
        %v1436 = vpack.c.b16 %v1420, %v1419
        %v1437 = vpack.c.b16 %v1421, %v1421
        %1454 = vst [vmem:[%s218] sm:$0xff] %v1422
        %1455 = vst [vmem:[%s218 + $0x8] sm:$0xff] %v1423
        %1456 = vst [vmem:[%s218 + $0x10] sm:$0xff] %v1424
        %1457 = vst [vmem:[%s218 + $0x18] sm:$0xf] %v1425
        %1458 = vst [vmem:[%s218 + $0x1c] sm:$0xff] %v1426
        %1459 = vst [vmem:[%s218 + $0x24] sm:$0xff] %v1427
        %1460 = vst [vmem:[%s218 + $0x2c] sm:$0xff] %v1428
        %1461 = vst [vmem:[%s218 + $0x34] sm:$0xf] %v1429
        %1462 = vst [vmem:[%s218 + $0x38] sm:$0xff] %v1430
        %1463 = vst [vmem:[%s218 + $0x40] sm:$0xff] %v1431
        %1464 = vst [vmem:[%s218 + $0x48] sm:$0xff] %v1432
        %1465 = vst [vmem:[%s218 + $0x50] sm:$0xf] %v1433
        %1466 = vst [vmem:[%s218 + $0x54] sm:$0xff] %v1434
        %1467 = vst [vmem:[%s218 + $0x5c] sm:$0xff] %v1435
        %1468 = vst [vmem:[%s218 + $0x64] sm:$0xff] %v1436
        %1469 = vst [vmem:[%s218 + $0x6c] sm:$0xf] %v1437
        %s1470 = sand.u32 %s137, 1
        %s1471 = scalar_lea.sflag [#allocation3], %s1470
        %s1472 = sand.u32 %s137, 1
        %s1473 = smul.addr %s1472, 112
        %s1474 = scalar_lea.vmem [#allocation2], %s1473
        // Predicated region
        $region41: #{generator_forward.1} parent=39 // pred_check
          %p1475 = pneg %p147
        $region42: #{generator_forward.1} parent=39 // pred_check_branch
          %1477 = sbr.rel (%p1475) target = $region44
        $region43: #{generator_forward.1} parent=39 // pred_region
          %s1478 = smul.u32 4, %s19
          %s1480 = ssub.s32 1792, 1792
          %1481 = vsyncadd %s1471, %s1480
          %s1482 = smul.addr %s1478, 7
          %s1483 = smul.addr %s1482, 64
          %s1484 = scalar_lea.hbm %s5, %s1483
          %s1485 = sshll.u32 %s1474, 4
          %s1486 = int_to_ptr.vmem [resolvable:$true] %s1485
          %1491 = dma.vmem_to_hbm [thread:$0]  %s1486, 1792, %s1484, %s1471, 448, 448, 28
        $region44: #{generator_forward.1} parent=39 // pred_fallthru
          _
      $region40: #{generator_forward.1} parent=5 // pred_fallthru
        _
      %p1492 = scmp.le.s32.totalorder 2, %s14
      // Predicated region
      $region45: #{generator_forward.1} parent=5 // pred_check
        %p1493 = pneg %p1492
      $region46: #{generator_forward.1} parent=5 // pred_check_branch
        %1495 = sbr.rel (%p1493) target = $region48
      $region47: #{generator_forward.1} parent=5 // pred_region
        %s1496 = ssub.s32 %s14, 2
        // Predicated region
        $region49: #{generator_forward.1} parent=47 // pred_check
          %p1497 = pneg %p153
        $region50: #{generator_forward.1} parent=47 // pred_check_branch
          %1499 = sbr.rel (%p1497) target = $region52
        $region51: #{generator_forward.1} parent=47 // pred_region
          %s1500 = sand.u32 %s138, 1
          %s1501 = scalar_lea.sflag [#allocation3], %s1500
          %s1502 = sand.u32 %s138, 1
          %s1503 = smul.addr %s1502, 112
          %s1504 = scalar_lea.vmem [#allocation2], %s1503
          %1505 = dma.done %s1501, 1792
        $region52: #{generator_forward.1} parent=47 // pred_fallthru
          _
      $region48: #{generator_forward.1} parent=5 // pred_fallthru
        _
    $region6: #{generator_forward.1} parent=1 // loop_footer
      %s18 = sadd.s32 1, %s14
    $region7: #{generator_forward.1} parent=1 // loop_footer_branch
      %13 = sbr.rel target = $region3
    $region8: #{generator_forward.1} parent=1 // loop_exit
      _
    %1506 = vsyncpa [#allocation3], 1
    %s1507 = scalar_lea.sflag [#allocation3], 1
    %1508 = vsyncpa %s1507, 1

</llo_original>
